<compile_context>
chip_gen: v5e
topology: v5e:2x2
jax: 0.10.0
libtpu: 0.0.40
codegen_flags: <defaults>
</compile_context>

<pallas_src>
import functools

import jax
import jax.numpy as jnp
from jax import lax
from jax.experimental import pallas as pl
from jax.experimental.pallas import tpu as pltpu


def _lstm_chunk_kernel(x_ref, w_ih_t_ref, w_hh_t_ref, b_ref, w_lin_t_ref,
                       b_lin_ref, out_ref, xp_scr, h_scr, c_scr, *, unroll):
    """One (batch-block, time-chunk) grid step of the LSTM recurrence.

    x_ref       : (Tc*Bb, D)   time-major chunk (row = t_local*Bb + b_local)
    w_ih_t_ref  : (D, 4H)      W_ih^T, sigmoid-gate columns pre-scaled by 0.5
    w_hh_t_ref  : (H, 4H)      W_hh^T, sigmoid-gate columns pre-scaled by 0.5
    b_ref       : (1, 4H)      b_ih + b_hh, sigmoid-gate lanes pre-scaled by 0.5
    w_lin_t_ref : (H, 1)       W_lin^T
    b_lin_ref   : (1, 1)       linear bias
    out_ref     : (Bb, 1)      predictions for this batch block
    xp_scr      : (Tc*Bb, 4H)  hoisted input projection for the chunk
    h_scr/c_scr : (Bb, H)      recurrent state carried across time chunks
    """
    tc = pl.program_id(1)
    n_tc = pl.num_programs(1)
    Bb = out_ref.shape[0]
    H = w_hh_t_ref.shape[0]
    H4 = 4 * H
    Tc = x_ref.shape[0] // Bb

    # --- Phase 1: input projection for every timestep of the chunk in one MXU
    # matmul (inputs optionally bf16; accumulation and everything after is f32).
    xp_scr[...] = (
        jnp.dot(x_ref[...], w_ih_t_ref[...], preferred_element_type=jnp.float32)
        + b_ref[...]
    )

    # --- Reset the recurrent state at the first time chunk of each batch block.
    @pl.when(tc == 0)
    def _():
        h_scr[...] = jnp.zeros_like(h_scr)
        c_scr[...] = jnp.zeros_like(c_scr)

    # Gate order [i, f, g, o].  Sigmoid gates go through the identity
    # sigmoid(z) = 0.5*tanh(z/2) + 0.5; the /2 is pre-folded into the weights,
    # so a single tanh over the whole (Bb, 4H) tile + a lane-masked VPU affine
    # replaces the former tanh + sigmoid double EUP pass per step.
    lane = lax.broadcasted_iota(jnp.int32, (Bb, H4), 1)
    tanh_lanes = (lane >= 2 * H) & (lane < 3 * H)

    # Read the recurrent RHS once so Mosaic can keep it staged in the MXU
    # across the whole time loop.  (If bundle dumps show per-step re-staging,
    # switch to pltpu.matmul_push_rhs / matmul_acc_lhs / matmul_pop.)
    w_hh_t = w_hh_t_ref[...]

    def step(t, carry):
        h_prev, c_prev = carry
        row = t * Bb
        if Bb % 8 == 0:
            row = pl.multiple_of(row, 8)            # sublane-aligned slice
        gates = xp_scr[pl.ds(row, Bb), :] + jnp.dot(
            h_prev, w_hh_t, preferred_element_type=jnp.float32)    # (Bb, 4H)
        th = jnp.tanh(gates)                        # single EUP pass per step
        act = jnp.where(tanh_lanes, th, 0.5 * th + 0.5)
        i_g = act[:, 0 * H:1 * H]
        f_g = act[:, 1 * H:2 * H]
        g_g = act[:, 2 * H:3 * H]
        o_g = act[:, 3 * H:4 * H]
        c_new = f_g * c_prev + i_g * g_g
        h_new = o_g * jnp.tanh(c_new)
        return h_new, c_new

    h_t, c_t = lax.fori_loop(0, Tc, step, (h_scr[...], c_scr[...]),
                             unroll=unroll)
    h_scr[...] = h_t
    c_scr[...] = c_t

    # --- Final Linear on the last hidden state, once per batch block.
    @pl.when(tc == n_tc - 1)
    def _():
        out_ref[...] = (
            jnp.dot(h_t, w_lin_t_ref[...], preferred_element_type=jnp.float32)
            + b_lin_ref[...]
        )


def lstm_regressor(x, w_ih, w_hh, b_ih, b_hh, w_lin, b_lin, *,
                   time_chunk=None, batch_blocks=1, input_proj_bf16=False):
    """LSTMRegressor.forward.  x: (B, T, D); PyTorch weight layout:
    w_ih (4H, D), w_hh (4H, H), b_ih (4H,), b_hh (4H,), w_lin (1, H), b_lin (1,).
    Returns (B, 1) float32.

    batch_blocks > 1 adds a leading "parallel" grid axis over batch blocks so
    each v7x TensorCore runs an independent recurrence (no benefit on the
    single-TensorCore v5e/v6e, hence the default of 1).
    """
    B, T, D = x.shape
    H = w_hh.shape[1]
    H4 = 4 * H

    assert B % batch_blocks == 0, "batch must divide evenly into batch_blocks"
    Bb = B // batch_blocks
    assert batch_blocks == 1 or Bb % 8 == 0, (
        "per-block batch must be a multiple of 8 (sublane alignment)")

    # Fold the 1/2 of sigmoid(z) = 0.5*tanh(z/2) + 0.5 into the i/f/o gate
    # columns of the weights and bias, so the kernel needs one tanh per step.
    col = jnp.arange(H4)
    col_scale = jnp.where((col >= 2 * H) & (col < 3 * H), 1.0, 0.5
                          ).astype(jnp.float32)                        # (4H,)
    proj_dtype = jnp.bfloat16 if input_proj_bf16 else jnp.float32
    w_ih_t = (w_ih.T.astype(jnp.float32) * col_scale).astype(proj_dtype)  # (D,4H)
    w_hh_t = w_hh.T.astype(jnp.float32) * col_scale                       # (H,4H)
    b = ((b_ih + b_hh).astype(jnp.float32) * col_scale).reshape(1, H4)    # (1,4H)
    w_lin_t = w_lin.T.astype(jnp.float32)                                 # (H,1)
    b_lin2 = b_lin.reshape(1, 1).astype(jnp.float32)                      # (1,1)

    # Time-major layout per batch block (row = t*Bb + b_local): keeps the
    # per-step xp slice contiguous on the serial recurrence path.  For very
    # large x, feed batch-major + strided per-step slices to skip this copy.
    x_l = (x.astype(proj_dtype)
            .reshape(batch_blocks, Bb, T, D)
            .transpose(0, 2, 1, 3)
            .reshape(batch_blocks, T * Bb, D))

    # Time-chunk size: bound the per-chunk VMEM footprint (x chunk is
    # double-buffered by the pipeline, xp scratch is single-buffered) so the
    # kernel stays well inside v7x's 64 MiB VMEM regardless of T.
    in_bytes = 2 if input_proj_bf16 else 4
    if time_chunk is None:
        per_t = Bb * (2 * D * in_bytes + H4 * 4)
        time_chunk = max(1, min(T, (8 << 20) // max(per_t, 1)))
    Tc = int(min(max(int(time_chunk), 1), T))
    while T % Tc:                       # keep the grid exact (Tc divides T)
        Tc -= 1
    n_tc = T // Tc

    # Partial unroll: keeps LLO scheduler visibility on long sequences without
    # blowing the 64-vreg file at large per-block batch.
    unroll = int(min(Tc, 8 if Bb < 64 else 4))

    vmem_est = (2 * Tc * Bb * D * in_bytes          # x chunk (double-buffered)
                + Tc * Bb * H4 * 4                  # xp scratch
                + D * H4 * in_bytes                 # W_ih^T
                + (H * H4 + H4 + H + 1 + Bb) * 4    # W_hh^T, b, W_lin^T, b_lin, out
                + 2 * Bb * H * 4)                   # h / c carry
    vmem_limit = int(min(max(2 * vmem_est, 32 << 20), 64 << 20))

    kernel = functools.partial(_lstm_chunk_kernel, unroll=unroll)

    return pl.pallas_call(
        kernel,
        out_shape=jax.ShapeDtypeStruct((B, 1), jnp.float32),
        grid=(batch_blocks, n_tc),
        in_specs=[
            pl.BlockSpec((None, Tc * Bb, D), lambda bb, tc: (bb, tc, 0)),  # x
            pl.BlockSpec((D, H4), lambda bb, tc: (0, 0)),                  # W_ih^T
            pl.BlockSpec((H, H4), lambda bb, tc: (0, 0)),                  # W_hh^T
            pl.BlockSpec((1, H4), lambda bb, tc: (0, 0)),                  # fused bias
            pl.BlockSpec((H, 1), lambda bb, tc: (0, 0)),                   # W_lin^T
            pl.BlockSpec((1, 1), lambda bb, tc: (0, 0)),                   # b_lin
        ],
        out_specs=pl.BlockSpec((Bb, 1), lambda bb, tc: (bb, 0)),
        scratch_shapes=[
            pltpu.VMEM((Tc * Bb, H4), jnp.float32),   # hoisted x-projection
            pltpu.VMEM((Bb, H), jnp.float32),         # h carry across chunks
            pltpu.VMEM((Bb, H), jnp.float32),         # c carry across chunks
        ],
        compiler_params=pltpu.CompilerParams(
            dimension_semantics=("parallel", "arbitrary"),
            vmem_limit_bytes=vmem_limit,
        ),
    )(x_l, w_ih_t, w_hh_t, b, w_lin_t, b_lin2)


def lstm_regressor_ref(x, w_ih, w_hh, b_ih, b_hh, w_lin, b_lin):
    """Plain-JAX reference mirroring PyTorch nn.LSTM + nn.Linear semantics."""
    B, T, D = x.shape
    H = w_hh.shape[1]
    h = jnp.zeros((B, H), jnp.float32)
    c = jnp.zeros((B, H), jnp.float32)
    for t in range(T):
        gates = x[:, t] @ w_ih.T + h @ w_hh.T + b_ih + b_hh
        i = jax.nn.sigmoid(gates[:, :H])
        f = jax.nn.sigmoid(gates[:, H:2 * H])
        g = jnp.tanh(gates[:, 2 * H:3 * H])
        o = jax.nn.sigmoid(gates[:, 3 * H:])
        c = f * c + i * g
        h = o * jnp.tanh(c)
    return h @ w_lin.T + b_lin


if __name__ == "__main__":
    # Small shapes consistent with the module: x is (batch, seq, input_dim).
    B, T, D, H = 8, 8, 16, 32

    key = jax.random.PRNGKey(0)
    k_x, k_x2, k_wih, k_whh, k_bih, k_bhh, k_wl, k_bl = jax.random.split(key, 8)

    scale = 1.0 / jnp.sqrt(jnp.float32(H))
    x = jax.random.normal(k_x, (B, T, D), jnp.float32)
    w_ih = jax.random.uniform(k_wih, (4 * H, D), jnp.float32, -scale, scale)
    w_hh = jax.random.uniform(k_whh, (4 * H, H), jnp.float32, -scale, scale)
    b_ih = jax.random.uniform(k_bih, (4 * H,), jnp.float32, -scale, scale)
    b_hh = jax.random.uniform(k_bhh, (4 * H,), jnp.float32, -scale, scale)
    w_lin = jax.random.uniform(k_wl, (1, H), jnp.float32, -scale, scale)
    b_lin = jax.random.uniform(k_bl, (1,), jnp.float32, -scale, scale)

    ref = lstm_regressor_ref(x, w_ih, w_hh, b_ih, b_hh, w_lin, b_lin)

    # 1) Default config (f32 projection; auto chunk => single time chunk here).
    out = jax.block_until_ready(
        lstm_regressor(x, w_ih, w_hh, b_ih, b_hh, w_lin, b_lin))
    assert out.shape == (B, 1), out.shape
    assert jnp.allclose(out, ref, atol=1e-4, rtol=1e-4), (out, ref)

    # 2) Multi-chunk time grid (exercises the h/c carry across grid steps).
    out_chunked = jax.block_until_ready(
        lstm_regressor(x, w_ih, w_hh, b_ih, b_hh, w_lin, b_lin, time_chunk=2))
    assert jnp.allclose(out_chunked, ref, atol=1e-4, rtol=1e-4), (out_chunked, ref)

    # 3) bf16 input projection (recurrence stays f32; looser tolerance).
    out_bf16 = jax.block_until_ready(
        lstm_regressor(x, w_ih, w_hh, b_ih, b_hh, w_lin, b_lin,
                       input_proj_bf16=True))
    assert jnp.allclose(out_bf16, ref, atol=5e-2, rtol=5e-2), (out_bf16, ref)

    # 4) Two batch blocks (the v7x dual-TensorCore path) at B=16.
    B2 = 16
    x2 = jax.random.normal(k_x2, (B2, T, D), jnp.float32)
    ref2 = lstm_regressor_ref(x2, w_ih, w_hh, b_ih, b_hh, w_lin, b_lin)
    out2 = jax.block_until_ready(
        lstm_regressor(x2, w_ih, w_hh, b_ih, b_hh, w_lin, b_lin,
                       batch_blocks=2, time_chunk=4))
    assert out2.shape == (B2, 1), out2.shape
    assert jnp.allclose(out2, ref2, atol=1e-4, rtol=1e-4), (out2, ref2)

    print("KERNEL_OK")
</pallas_src>

<mosaic_0001>
module attributes {stable_mosaic.version = 11 : i64} {
  func.func @_lstm_chunk_kernel(%arg0: i32, %arg1: i32, %arg2: memref<1x64x16xf32, #tpu.memory_space<vmem>>, %arg3: memref<16x128xf32, #tpu.memory_space<vmem>>, %arg4: memref<32x128xf32, #tpu.memory_space<vmem>>, %arg5: memref<1x128xf32, #tpu.memory_space<vmem>>, %arg6: memref<32x1xf32, #tpu.memory_space<vmem>>, %arg7: memref<1x1xf32, #tpu.memory_space<vmem>>, %arg8: memref<8x1xf32, #tpu.memory_space<vmem>>, %arg9: memref<64x128xf32, #tpu.memory_space<vmem>>, %arg10: memref<8x32xf32, #tpu.memory_space<vmem>>, %arg11: memref<8x32xf32, #tpu.memory_space<vmem>>) attributes {dimension_semantics = [#tpu.dimension_semantics<parallel>, #tpu.dimension_semantics<arbitrary>], iteration_bounds = array<i64: 1, 1>, scalar_prefetch = 0 : i64, scratch_operands = 3 : i64, tpu.core_type = #tpu.core_type<tc>, window_params = [{transform_indices = @transform_0, window_bounds = array<i64: 1, 64, 16>}, {pipeline_mode = #tpu.pipeline_mode<synchronous>, transform_indices = @transform_1, window_bounds = array<i64: 16, 128>}, {pipeline_mode = #tpu.pipeline_mode<synchronous>, transform_indices = @transform_2, window_bounds = array<i64: 32, 128>}, {pipeline_mode = #tpu.pipeline_mode<synchronous>, transform_indices = @transform_3, window_bounds = array<i64: 1, 128>}, {pipeline_mode = #tpu.pipeline_mode<synchronous>, transform_indices = @transform_4, window_bounds = array<i64: 32, 1>}, {pipeline_mode = #tpu.pipeline_mode<synchronous>, transform_indices = @transform_5, window_bounds = array<i64: 1, 1>}, {transform_indices = @transform_6, window_bounds = array<i64: 8, 1>}]} {
    %c0 = arith.constant 0 : index
    %c0_0 = arith.constant 0 : index
    %c0_1 = arith.constant 0 : index
    %0 = vector.load %arg2[%c0, %c0_0, %c0_1] : memref<1x64x16xf32, #tpu.memory_space<vmem>>, vector<1x64x16xf32>
    %1 = vector.shape_cast %0 : vector<1x64x16xf32> to vector<64x16xf32>
    %c0_2 = arith.constant 0 : index
    %c0_3 = arith.constant 0 : index
    %2 = vector.load %arg3[%c0_2, %c0_3] : memref<16x128xf32, #tpu.memory_space<vmem>>, vector<16x128xf32>
    %cst = arith.constant dense<0.000000e+00> : vector<64x128xf32>
    %3 = tpu.matmul %1, %2, %cst {dimension_numbers = #tpu.dot_dimension_numbers<[1], [0], [0], [1], [0, 0, 1, 1], [], []>} : vector<64x16xf32>, vector<16x128xf32>, vector<64x128xf32> -> vector<64x128xf32>
    %c0_4 = arith.constant 0 : index
    %c0_5 = arith.constant 0 : index
    %4 = vector.load %arg5[%c0_4, %c0_5] : memref<1x128xf32, #tpu.memory_space<vmem>>, vector<1x128xf32>
    %5 = vector.broadcast %4 : vector<1x128xf32> to vector<64x128xf32>
    %6 = arith.addf %3, %5 : vector<64x128xf32>
    %c0_6 = arith.constant 0 : index
    %c0_7 = arith.constant 0 : index
    %7 = vector.load %arg9[%c0_6, %c0_7] : memref<64x128xf32, #tpu.memory_space<vmem>>, vector<64x128xf32>
    tpu.vector_store %arg9[%c0_6, %c0_7], %6 {strides = array<i32>} : memref<64x128xf32, #tpu.memory_space<vmem>>, vector<64x128xf32>,
    %c0_i32 = arith.constant 0 : i32
    %8 = arith.cmpi eq, %arg1, %c0_i32 : i32
    %9 = arith.extui %8 : i1 to i32
    %c0_i32_8 = arith.constant 0 : i32
    %10 = arith.cmpi ne, %9, %c0_i32_8 : i32
    scf.if %10 {
      %cst_62 = arith.constant 0.000000e+00 : f32
      %193 = vector.broadcast %cst_62 : f32 to vector<8x32xf32>
      %c0_63 = arith.constant 0 : index
      %c0_64 = arith.constant 0 : index
      %194 = vector.load %arg10[%c0_63, %c0_64] : memref<8x32xf32, #tpu.memory_space<vmem>>, vector<8x32xf32>
      tpu.vector_store %arg10[%c0_63, %c0_64], %193 {strides = array<i32>} : memref<8x32xf32, #tpu.memory_space<vmem>>, vector<8x32xf32>,
      %cst_65 = arith.constant 0.000000e+00 : f32
      %195 = vector.broadcast %cst_65 : f32 to vector<8x32xf32>
      %c0_66 = arith.constant 0 : index
      %c0_67 = arith.constant 0 : index
      %196 = vector.load %arg11[%c0_66, %c0_67] : memref<8x32xf32, #tpu.memory_space<vmem>>, vector<8x32xf32>
      tpu.vector_store %arg11[%c0_66, %c0_67], %195 {strides = array<i32>} : memref<8x32xf32, #tpu.memory_space<vmem>>, vector<8x32xf32>,
    } else {
    }
    %11 = tpu.iota {dimensions = array<i32: 1>} : vector<8x128xi32>
    %c64_i32 = arith.constant 64 : i32
    %12 = vector.broadcast %c64_i32 : i32 to vector<8x128xi32>
    %13 = arith.cmpi sge, %11, %12 : vector<8x128xi32>
    %c96_i32 = arith.constant 96 : i32
    %14 = vector.broadcast %c96_i32 : i32 to vector<8x128xi32>
    %15 = arith.cmpi slt, %11, %14 : vector<8x128xi32>
    %16 = arith.andi %13, %15 : vector<8x128xi1>
    %c0_9 = arith.constant 0 : index
    %c0_10 = arith.constant 0 : index
    %17 = vector.load %arg4[%c0_9, %c0_10] : memref<32x128xf32, #tpu.memory_space<vmem>>, vector<32x128xf32>
    %c0_11 = arith.constant 0 : index
    %c0_12 = arith.constant 0 : index
    %18 = vector.load %arg10[%c0_11, %c0_12] : memref<8x32xf32, #tpu.memory_space<vmem>>, vector<8x32xf32>
    %c0_13 = arith.constant 0 : index
    %c0_14 = arith.constant 0 : index
    %19 = vector.load %arg11[%c0_13, %c0_14] : memref<8x32xf32, #tpu.memory_space<vmem>>, vector<8x32xf32>
    %c0_i32_15 = arith.constant 0 : i32
    %c8_i32 = arith.constant 8 : i32
    %20 = arith.muli %c0_i32_15, %c8_i32 : i32
    %21 = tpu.assume_multiple %20, 8 : i32
    %22 = arith.index_cast %21 : i32 to index
    %c0_16 = arith.constant 0 : index
    %23 = vector.load %arg9[%22, %c0_16] : memref<64x128xf32, #tpu.memory_space<vmem>>, vector<8x128xf32>
    %cst_17 = arith.constant dense<0.000000e+00> : vector<8x128xf32>
    %24 = tpu.matmul %18, %17, %cst_17 {dimension_numbers = #tpu.dot_dimension_numbers<[1], [0], [0], [1], [0, 0, 1, 1], [], []>} : vector<8x32xf32>, vector<32x128xf32>, vector<8x128xf32> -> vector<8x128xf32>
    %25 = arith.addf %23, %24 : vector<8x128xf32>
    %26 = math.tanh %25 : vector<8x128xf32>
    %cst_18 = arith.constant 5.000000e-01 : f32
    %27 = vector.broadcast %cst_18 : f32 to vector<8x128xf32>
    %28 = arith.mulf %27, %26 : vector<8x128xf32>
    %cst_19 = arith.constant 5.000000e-01 : f32
    %29 = vector.broadcast %cst_19 : f32 to vector<8x128xf32>
    %30 = arith.addf %28, %29 : vector<8x128xf32>
    %31 = arith.select %16, %26, %30 : vector<8x128xi1>, vector<8x128xf32>
    %32 = vector.extract_strided_slice %31 {offsets = [0, 0], sizes = [8, 32], strides = [1, 1]} : vector<8x128xf32> to vector<8x32xf32>
    %33 = vector.extract_strided_slice %31 {offsets = [0, 32], sizes = [8, 32], strides = [1, 1]} : vector<8x128xf32> to vector<8x32xf32>
    %34 = vector.extract_strided_slice %31 {offsets = [0, 64], sizes = [8, 32], strides = [1, 1]} : vector<8x128xf32> to vector<8x32xf32>
    %35 = vector.extract_strided_slice %31 {offsets = [0, 96], sizes = [8, 32], strides = [1, 1]} : vector<8x128xf32> to vector<8x32xf32>
    %36 = arith.mulf %33, %19 : vector<8x32xf32>
    %37 = arith.mulf %32, %34 : vector<8x32xf32>
    %38 = arith.addf %36, %37 : vector<8x32xf32>
    %39 = math.tanh %38 : vector<8x32xf32>
    %40 = arith.mulf %35, %39 : vector<8x32xf32>
    %c1_i32 = arith.constant 1 : i32
    %c8_i32_20 = arith.constant 8 : i32
    %41 = arith.muli %c1_i32, %c8_i32_20 : i32
    %42 = tpu.assume_multiple %41, 8 : i32
    %43 = arith.index_cast %42 : i32 to index
    %c0_21 = arith.constant 0 : index
    %44 = vector.load %arg9[%43, %c0_21] : memref<64x128xf32, #tpu.memory_space<vmem>>, vector<8x128xf32>
    %cst_22 = arith.constant dense<0.000000e+00> : vector<8x128xf32>
    %45 = tpu.matmul %40, %17, %cst_22 {dimension_numbers = #tpu.dot_dimension_numbers<[1], [0], [0], [1], [0, 0, 1, 1], [], []>} : vector<8x32xf32>, vector<32x128xf32>, vector<8x128xf32> -> vector<8x128xf32>
    %46 = arith.addf %44, %45 : vector<8x128xf32>
    %47 = math.tanh %46 : vector<8x128xf32>
    %cst_23 = arith.constant 5.000000e-01 : f32
    %48 = vector.broadcast %cst_23 : f32 to vector<8x128xf32>
    %49 = arith.mulf %48, %47 : vector<8x128xf32>
    %cst_24 = arith.constant 5.000000e-01 : f32
    %50 = vector.broadcast %cst_24 : f32 to vector<8x128xf32>
    %51 = arith.addf %49, %50 : vector<8x128xf32>
    %52 = arith.select %16, %47, %51 : vector<8x128xi1>, vector<8x128xf32>
    %53 = vector.extract_strided_slice %52 {offsets = [0, 0], sizes = [8, 32], strides = [1, 1]} : vector<8x128xf32> to vector<8x32xf32>
    %54 = vector.extract_strided_slice %52 {offsets = [0, 32], sizes = [8, 32], strides = [1, 1]} : vector<8x128xf32> to vector<8x32xf32>
    %55 = vector.extract_strided_slice %52 {offsets = [0, 64], sizes = [8, 32], strides = [1, 1]} : vector<8x128xf32> to vector<8x32xf32>
    %56 = vector.extract_strided_slice %52 {offsets = [0, 96], sizes = [8, 32], strides = [1, 1]} : vector<8x128xf32> to vector<8x32xf32>
    %57 = arith.mulf %54, %38 : vector<8x32xf32>
    %58 = arith.mulf %53, %55 : vector<8x32xf32>
    %59 = arith.addf %57, %58 : vector<8x32xf32>
    %60 = math.tanh %59 : vector<8x32xf32>
    %61 = arith.mulf %56, %60 : vector<8x32xf32>
    %c2_i32 = arith.constant 2 : i32
    %c8_i32_25 = arith.constant 8 : i32
    %62 = arith.muli %c2_i32, %c8_i32_25 : i32
    %63 = tpu.assume_multiple %62, 8 : i32
    %64 = arith.index_cast %63 : i32 to index
    %c0_26 = arith.constant 0 : index
    %65 = vector.load %arg9[%64, %c0_26] : memref<64x128xf32, #tpu.memory_space<vmem>>, vector<8x128xf32>
    %cst_27 = arith.constant dense<0.000000e+00> : vector<8x128xf32>
    %66 = tpu.matmul %61, %17, %cst_27 {dimension_numbers = #tpu.dot_dimension_numbers<[1], [0], [0], [1], [0, 0, 1, 1], [], []>} : vector<8x32xf32>, vector<32x128xf32>, vector<8x128xf32> -> vector<8x128xf32>
    %67 = arith.addf %65, %66 : vector<8x128xf32>
    %68 = math.tanh %67 : vector<8x128xf32>
    %cst_28 = arith.constant 5.000000e-01 : f32
    %69 = vector.broadcast %cst_28 : f32 to vector<8x128xf32>
    %70 = arith.mulf %69, %68 : vector<8x128xf32>
    %cst_29 = arith.constant 5.000000e-01 : f32
    %71 = vector.broadcast %cst_29 : f32 to vector<8x128xf32>
    %72 = arith.addf %70, %71 : vector<8x128xf32>
    %73 = arith.select %16, %68, %72 : vector<8x128xi1>, vector<8x128xf32>
    %74 = vector.extract_strided_slice %73 {offsets = [0, 0], sizes = [8, 32], strides = [1, 1]} : vector<8x128xf32> to vector<8x32xf32>
    %75 = vector.extract_strided_slice %73 {offsets = [0, 32], sizes = [8, 32], strides = [1, 1]} : vector<8x128xf32> to vector<8x32xf32>
    %76 = vector.extract_strided_slice %73 {offsets = [0, 64], sizes = [8, 32], strides = [1, 1]} : vector<8x128xf32> to vector<8x32xf32>
    %77 = vector.extract_strided_slice %73 {offsets = [0, 96], sizes = [8, 32], strides = [1, 1]} : vector<8x128xf32> to vector<8x32xf32>
    %78 = arith.mulf %75, %59 : vector<8x32xf32>
    %79 = arith.mulf %74, %76 : vector<8x32xf32>
    %80 = arith.addf %78, %79 : vector<8x32xf32>
    %81 = math.tanh %80 : vector<8x32xf32>
    %82 = arith.mulf %77, %81 : vector<8x32xf32>
    %c3_i32 = arith.constant 3 : i32
    %c8_i32_30 = arith.constant 8 : i32
    %83 = arith.muli %c3_i32, %c8_i32_30 : i32
    %84 = tpu.assume_multiple %83, 8 : i32
    %85 = arith.index_cast %84 : i32 to index
    %c0_31 = arith.constant 0 : index
    %86 = vector.load %arg9[%85, %c0_31] : memref<64x128xf32, #tpu.memory_space<vmem>>, vector<8x128xf32>
    %cst_32 = arith.constant dense<0.000000e+00> : vector<8x128xf32>
    %87 = tpu.matmul %82, %17, %cst_32 {dimension_numbers = #tpu.dot_dimension_numbers<[1], [0], [0], [1], [0, 0, 1, 1], [], []>} : vector<8x32xf32>, vector<32x128xf32>, vector<8x128xf32> -> vector<8x128xf32>
    %88 = arith.addf %86, %87 : vector<8x128xf32>
    %89 = math.tanh %88 : vector<8x128xf32>
    %cst_33 = arith.constant 5.000000e-01 : f32
    %90 = vector.broadcast %cst_33 : f32 to vector<8x128xf32>
    %91 = arith.mulf %90, %89 : vector<8x128xf32>
    %cst_34 = arith.constant 5.000000e-01 : f32
    %92 = vector.broadcast %cst_34 : f32 to vector<8x128xf32>
    %93 = arith.addf %91, %92 : vector<8x128xf32>
    %94 = arith.select %16, %89, %93 : vector<8x128xi1>, vector<8x128xf32>
    %95 = vector.extract_strided_slice %94 {offsets = [0, 0], sizes = [8, 32], strides = [1, 1]} : vector<8x128xf32> to vector<8x32xf32>
    %96 = vector.extract_strided_slice %94 {offsets = [0, 32], sizes = [8, 32], strides = [1, 1]} : vector<8x128xf32> to vector<8x32xf32>
    %97 = vector.extract_strided_slice %94 {offsets = [0, 64], sizes = [8, 32], strides = [1, 1]} : vector<8x128xf32> to vector<8x32xf32>
    %98 = vector.extract_strided_slice %94 {offsets = [0, 96], sizes = [8, 32], strides = [1, 1]} : vector<8x128xf32> to vector<8x32xf32>
    %99 = arith.mulf %96, %80 : vector<8x32xf32>
    %100 = arith.mulf %95, %97 : vector<8x32xf32>
    %101 = arith.addf %99, %100 : vector<8x32xf32>
    %102 = math.tanh %101 : vector<8x32xf32>
    %103 = arith.mulf %98, %102 : vector<8x32xf32>
    %c4_i32 = arith.constant 4 : i32
    %c8_i32_35 = arith.constant 8 : i32
    %104 = arith.muli %c4_i32, %c8_i32_35 : i32
    %105 = tpu.assume_multiple %104, 8 : i32
    %106 = arith.index_cast %105 : i32 to index
    %c0_36 = arith.constant 0 : index
    %107 = vector.load %arg9[%106, %c0_36] : memref<64x128xf32, #tpu.memory_space<vmem>>, vector<8x128xf32>
    %cst_37 = arith.constant dense<0.000000e+00> : vector<8x128xf32>
    %108 = tpu.matmul %103, %17, %cst_37 {dimension_numbers = #tpu.dot_dimension_numbers<[1], [0], [0], [1], [0, 0, 1, 1], [], []>} : vector<8x32xf32>, vector<32x128xf32>, vector<8x128xf32> -> vector<8x128xf32>
    %109 = arith.addf %107, %108 : vector<8x128xf32>
    %110 = math.tanh %109 : vector<8x128xf32>
    %cst_38 = arith.constant 5.000000e-01 : f32
    %111 = vector.broadcast %cst_38 : f32 to vector<8x128xf32>
    %112 = arith.mulf %111, %110 : vector<8x128xf32>
    %cst_39 = arith.constant 5.000000e-01 : f32
    %113 = vector.broadcast %cst_39 : f32 to vector<8x128xf32>
    %114 = arith.addf %112, %113 : vector<8x128xf32>
    %115 = arith.select %16, %110, %114 : vector<8x128xi1>, vector<8x128xf32>
    %116 = vector.extract_strided_slice %115 {offsets = [0, 0], sizes = [8, 32], strides = [1, 1]} : vector<8x128xf32> to vector<8x32xf32>
    %117 = vector.extract_strided_slice %115 {offsets = [0, 32], sizes = [8, 32], strides = [1, 1]} : vector<8x128xf32> to vector<8x32xf32>
    %118 = vector.extract_strided_slice %115 {offsets = [0, 64], sizes = [8, 32], strides = [1, 1]} : vector<8x128xf32> to vector<8x32xf32>
    %119 = vector.extract_strided_slice %115 {offsets = [0, 96], sizes = [8, 32], strides = [1, 1]} : vector<8x128xf32> to vector<8x32xf32>
    %120 = arith.mulf %117, %101 : vector<8x32xf32>
    %121 = arith.mulf %116, %118 : vector<8x32xf32>
    %122 = arith.addf %120, %121 : vector<8x32xf32>
    %123 = math.tanh %122 : vector<8x32xf32>
    %124 = arith.mulf %119, %123 : vector<8x32xf32>
    %c5_i32 = arith.constant 5 : i32
    %c8_i32_40 = arith.constant 8 : i32
    %125 = arith.muli %c5_i32, %c8_i32_40 : i32
    %126 = tpu.assume_multiple %125, 8 : i32
    %127 = arith.index_cast %126 : i32 to index
    %c0_41 = arith.constant 0 : index
    %128 = vector.load %arg9[%127, %c0_41] : memref<64x128xf32, #tpu.memory_space<vmem>>, vector<8x128xf32>
    %cst_42 = arith.constant dense<0.000000e+00> : vector<8x128xf32>
    %129 = tpu.matmul %124, %17, %cst_42 {dimension_numbers = #tpu.dot_dimension_numbers<[1], [0], [0], [1], [0, 0, 1, 1], [], []>} : vector<8x32xf32>, vector<32x128xf32>, vector<8x128xf32> -> vector<8x128xf32>
    %130 = arith.addf %128, %129 : vector<8x128xf32>
    %131 = math.tanh %130 : vector<8x128xf32>
    %cst_43 = arith.constant 5.000000e-01 : f32
    %132 = vector.broadcast %cst_43 : f32 to vector<8x128xf32>
    %133 = arith.mulf %132, %131 : vector<8x128xf32>
    %cst_44 = arith.constant 5.000000e-01 : f32
    %134 = vector.broadcast %cst_44 : f32 to vector<8x128xf32>
    %135 = arith.addf %133, %134 : vector<8x128xf32>
    %136 = arith.select %16, %131, %135 : vector<8x128xi1>, vector<8x128xf32>
    %137 = vector.extract_strided_slice %136 {offsets = [0, 0], sizes = [8, 32], strides = [1, 1]} : vector<8x128xf32> to vector<8x32xf32>
    %138 = vector.extract_strided_slice %136 {offsets = [0, 32], sizes = [8, 32], strides = [1, 1]} : vector<8x128xf32> to vector<8x32xf32>
    %139 = vector.extract_strided_slice %136 {offsets = [0, 64], sizes = [8, 32], strides = [1, 1]} : vector<8x128xf32> to vector<8x32xf32>
    %140 = vector.extract_strided_slice %136 {offsets = [0, 96], sizes = [8, 32], strides = [1, 1]} : vector<8x128xf32> to vector<8x32xf32>
    %141 = arith.mulf %138, %122 : vector<8x32xf32>
    %142 = arith.mulf %137, %139 : vector<8x32xf32>
    %143 = arith.addf %141, %142 : vector<8x32xf32>
    %144 = math.tanh %143 : vector<8x32xf32>
    %145 = arith.mulf %140, %144 : vector<8x32xf32>
    %c6_i32 = arith.constant 6 : i32
    %c8_i32_45 = arith.constant 8 : i32
    %146 = arith.muli %c6_i32, %c8_i32_45 : i32
    %147 = tpu.assume_multiple %146, 8 : i32
    %148 = arith.index_cast %147 : i32 to index
    %c0_46 = arith.constant 0 : index
    %149 = vector.load %arg9[%148, %c0_46] : memref<64x128xf32, #tpu.memory_space<vmem>>, vector<8x128xf32>
    %cst_47 = arith.constant dense<0.000000e+00> : vector<8x128xf32>
    %150 = tpu.matmul %145, %17, %cst_47 {dimension_numbers = #tpu.dot_dimension_numbers<[1], [0], [0], [1], [0, 0, 1, 1], [], []>} : vector<8x32xf32>, vector<32x128xf32>, vector<8x128xf32> -> vector<8x128xf32>
    %151 = arith.addf %149, %150 : vector<8x128xf32>
    %152 = math.tanh %151 : vector<8x128xf32>
    %cst_48 = arith.constant 5.000000e-01 : f32
    %153 = vector.broadcast %cst_48 : f32 to vector<8x128xf32>
    %154 = arith.mulf %153, %152 : vector<8x128xf32>
    %cst_49 = arith.constant 5.000000e-01 : f32
    %155 = vector.broadcast %cst_49 : f32 to vector<8x128xf32>
    %156 = arith.addf %154, %155 : vector<8x128xf32>
    %157 = arith.select %16, %152, %156 : vector<8x128xi1>, vector<8x128xf32>
    %158 = vector.extract_strided_slice %157 {offsets = [0, 0], sizes = [8, 32], strides = [1, 1]} : vector<8x128xf32> to vector<8x32xf32>
    %159 = vector.extract_strided_slice %157 {offsets = [0, 32], sizes = [8, 32], strides = [1, 1]} : vector<8x128xf32> to vector<8x32xf32>
    %160 = vector.extract_strided_slice %157 {offsets = [0, 64], sizes = [8, 32], strides = [1, 1]} : vector<8x128xf32> to vector<8x32xf32>
    %161 = vector.extract_strided_slice %157 {offsets = [0, 96], sizes = [8, 32], strides = [1, 1]} : vector<8x128xf32> to vector<8x32xf32>
    %162 = arith.mulf %159, %143 : vector<8x32xf32>
    %163 = arith.mulf %158, %160 : vector<8x32xf32>
    %164 = arith.addf %162, %163 : vector<8x32xf32>
    %165 = math.tanh %164 : vector<8x32xf32>
    %166 = arith.mulf %161, %165 : vector<8x32xf32>
    %c7_i32 = arith.constant 7 : i32
    %c8_i32_50 = arith.constant 8 : i32
    %167 = arith.muli %c7_i32, %c8_i32_50 : i32
    %168 = tpu.assume_multiple %167, 8 : i32
    %169 = arith.index_cast %168 : i32 to index
    %c0_51 = arith.constant 0 : index
    %170 = vector.load %arg9[%169, %c0_51] : memref<64x128xf32, #tpu.memory_space<vmem>>, vector<8x128xf32>
    %cst_52 = arith.constant dense<0.000000e+00> : vector<8x128xf32>
    %171 = tpu.matmul %166, %17, %cst_52 {dimension_numbers = #tpu.dot_dimension_numbers<[1], [0], [0], [1], [0, 0, 1, 1], [], []>} : vector<8x32xf32>, vector<32x128xf32>, vector<8x128xf32> -> vector<8x128xf32>
    %172 = arith.addf %170, %171 : vector<8x128xf32>
    %173 = math.tanh %172 : vector<8x128xf32>
    %cst_53 = arith.constant 5.000000e-01 : f32
    %174 = vector.broadcast %cst_53 : f32 to vector<8x128xf32>
    %175 = arith.mulf %174, %173 : vector<8x128xf32>
    %cst_54 = arith.constant 5.000000e-01 : f32
    %176 = vector.broadcast %cst_54 : f32 to vector<8x128xf32>
    %177 = arith.addf %175, %176 : vector<8x128xf32>
    %178 = arith.select %16, %173, %177 : vector<8x128xi1>, vector<8x128xf32>
    %179 = vector.extract_strided_slice %178 {offsets = [0, 0], sizes = [8, 32], strides = [1, 1]} : vector<8x128xf32> to vector<8x32xf32>
    %180 = vector.extract_strided_slice %178 {offsets = [0, 32], sizes = [8, 32], strides = [1, 1]} : vector<8x128xf32> to vector<8x32xf32>
    %181 = vector.extract_strided_slice %178 {offsets = [0, 64], sizes = [8, 32], strides = [1, 1]} : vector<8x128xf32> to vector<8x32xf32>
    %182 = vector.extract_strided_slice %178 {offsets = [0, 96], sizes = [8, 32], strides = [1, 1]} : vector<8x128xf32> to vector<8x32xf32>
    %183 = arith.mulf %180, %164 : vector<8x32xf32>
    %184 = arith.mulf %179, %181 : vector<8x32xf32>
    %185 = arith.addf %183, %184 : vector<8x32xf32>
    %186 = math.tanh %185 : vector<8x32xf32>
    %187 = arith.mulf %182, %186 : vector<8x32xf32>
    %c8_i32_55 = arith.constant 8 : i32
    %c0_56 = arith.constant 0 : index
    %c0_57 = arith.constant 0 : index
    %188 = vector.load %arg10[%c0_56, %c0_57] : memref<8x32xf32, #tpu.memory_space<vmem>>, vector<8x32xf32>
    tpu.vector_store %arg10[%c0_56, %c0_57], %187 {strides = array<i32>} : memref<8x32xf32, #tpu.memory_space<vmem>>, vector<8x32xf32>,
    %c0_58 = arith.constant 0 : index
    %c0_59 = arith.constant 0 : index
    %189 = vector.load %arg11[%c0_58, %c0_59] : memref<8x32xf32, #tpu.memory_space<vmem>>, vector<8x32xf32>
    tpu.vector_store %arg11[%c0_58, %c0_59], %185 {strides = array<i32>} : memref<8x32xf32, #tpu.memory_space<vmem>>, vector<8x32xf32>,
    %c0_i32_60 = arith.constant 0 : i32
    %190 = arith.cmpi eq, %arg1, %c0_i32_60 : i32
    %191 = arith.extui %190 : i1 to i32
    %c0_i32_61 = arith.constant 0 : i32
    %192 = arith.cmpi ne, %191, %c0_i32_61 : i32
    scf.if %192 {
      %c0_62 = arith.constant 0 : index
      %c0_63 = arith.constant 0 : index
      %193 = vector.load %arg6[%c0_62, %c0_63] : memref<32x1xf32, #tpu.memory_space<vmem>>, vector<32x1xf32>
      %cst_64 = arith.constant dense<0.000000e+00> : vector<8x1xf32>
      %194 = tpu.matmul %187, %193, %cst_64 {dimension_numbers = #tpu.dot_dimension_numbers<[1], [0], [0], [1], [0, 0, 1, 1], [], []>} : vector<8x32xf32>, vector<32x1xf32>, vector<8x1xf32> -> vector<8x1xf32>
      %c0_65 = arith.constant 0 : index
      %c0_66 = arith.constant 0 : index
      %195 = vector.load %arg7[%c0_65, %c0_66] : memref<1x1xf32, #tpu.memory_space<vmem>>, vector<1x1xf32>
      %196 = vector.broadcast %195 : vector<1x1xf32> to vector<8x1xf32>
      %197 = arith.addf %194, %196 : vector<8x1xf32>
      %c0_67 = arith.constant 0 : index
      %c0_68 = arith.constant 0 : index
      %198 = vector.load %arg8[%c0_67, %c0_68] : memref<8x1xf32, #tpu.memory_space<vmem>>, vector<8x1xf32>
      tpu.vector_store %arg8[%c0_67, %c0_68], %197 {strides = array<i32>} : memref<8x1xf32, #tpu.memory_space<vmem>>, vector<8x1xf32>,
    } else {
    }
    return
  }
  func.func @transform_0(%arg0: i32, %arg1: i32) -> (i32, i32, i32) {
    %c0_i32 = arith.constant 0 : i32
    %c0_i32_0 = arith.constant 0 : i32
    return %arg0, %arg1, %c0_i32 : i32, i32, i32
  }
  func.func @transform_1(%arg0: i32, %arg1: i32) -> (i32, i32) {
    %c0_i32 = arith.constant 0 : i32
    %c0_i32_0 = arith.constant 0 : i32
    %c0_i32_1 = arith.constant 0 : i32
    return %c0_i32, %c0_i32_0 : i32, i32
  }
  func.func @transform_2(%arg0: i32, %arg1: i32) -> (i32, i32) {
    %c0_i32 = arith.constant 0 : i32
    %c0_i32_0 = arith.constant 0 : i32
    %c0_i32_1 = arith.constant 0 : i32
    return %c0_i32, %c0_i32_0 : i32, i32
  }
  func.func @transform_3(%arg0: i32, %arg1: i32) -> (i32, i32) {
    %c0_i32 = arith.constant 0 : i32
    %c0_i32_0 = arith.constant 0 : i32
    %c0_i32_1 = arith.constant 0 : i32
    return %c0_i32, %c0_i32_0 : i32, i32
  }
  func.func @transform_4(%arg0: i32, %arg1: i32) -> (i32, i32) {
    %c0_i32 = arith.constant 0 : i32
    %c0_i32_0 = arith.constant 0 : i32
    %c0_i32_1 = arith.constant 0 : i32
    return %c0_i32, %c0_i32_0 : i32, i32
  }
  func.func @transform_5(%arg0: i32, %arg1: i32) -> (i32, i32) {
    %c0_i32 = arith.constant 0 : i32
    %c0_i32_0 = arith.constant 0 : i32
    %c0_i32_1 = arith.constant 0 : i32
    return %c0_i32, %c0_i32_0 : i32, i32
  }
  func.func @transform_6(%arg0: i32, %arg1: i32) -> (i32, i32) {
    %c0_i32 = arith.constant 0 : i32
    %c0_i32_0 = arith.constant 0 : i32
    return %arg0, %c0_i32 : i32, i32
  }
}

</mosaic_0001>

<llo_original>
// kernel: tpu_custom_call.1
$region0: #{tpu_custom_call.1}
  #allocation0 [shape = 'u32[]', space=smem, size = 0x4, offset = 0x4, fixed_abs, tag = 'smem constant byte address 0x4 - core index']
  #allocation1 [shape = 'u32[72,128]{1,0:T(1,128)}', space=vmem, size = 0x9000, scoped, tag = 'internal scratch']
  #allocation2 [shape = 'f32[64,128]{1,0:T(8,128)}', space=vmem, size = 0x8000, scoped, tag = 'scratch operand']
  #allocation3 [shape = 'f32[8,32]{1,0:T(8,128)}', space=vmem, size = 0x1000, scoped, tag = 'scratch operand']
  #allocation4 [shape = 'f32[8,32]{1,0:T(8,128)}', space=vmem, size = 0x1000, scoped, tag = 'scratch operand']
  #allocation5 [shape = 'f32[1,1]{1,0:T(1,128)S(1)}', space=vmem, size = 0x200, scoped, tag = 'scoped memory for tpu_custom_call.1']
  %s0 = inlined_call_operand.vmem [shape: f32[1,64,16], index: 0, kind: input, shape index: {}]
  %s1 = inlined_call_operand.vmem [shape: f32[16,128], index: 1, kind: input, shape index: {}]
  %s2 = inlined_call_operand.vmem [shape: f32[32,128], index: 2, kind: input, shape index: {}]
  %s3 = inlined_call_operand.vmem [shape: f32[1,128], index: 3, kind: input, shape index: {}]
  %s4 = inlined_call_operand.vmem [shape: f32[32,1], index: 4, kind: input, shape index: {}]
  %s5 = inlined_call_operand.<no memory space> [shape: f32[1,1], index: 5, kind: input, shape index: {}]
  %s6 = inlined_call_operand.vmem [shape: f32[8,1], index: 6, kind: output, shape index: {}]
  %s7 = sld [smem:[#allocation0]]
  $region42: #{tpu_custom_call.1} parent=0
    _
  %s9 = ssub.s32 1, %s7
  %s10 = scalar_select 0, %s9, %s7
  %v11 = vstv %s5
  %12 = vst [vmem:[#allocation5] sm:$0x1] %v11
  // Predicated region
  $region2: #{tpu_custom_call.1} parent=0 // pred_check
    _
  $region3: #{tpu_custom_call.1} parent=0 // pred_check_branch
    %14 = sbr.rel (0) target = $region5
  $region4: #{tpu_custom_call.1} parent=0 // pred_region
    _
  $region5: #{tpu_custom_call.1} parent=0 // pred_fallthru
    _
  // Predicated region
  $region6: #{tpu_custom_call.1} parent=0 // pred_check
    _
  $region7: #{tpu_custom_call.1} parent=0 // pred_check_branch
    %16 = sbr.rel (0) target = $region9
  $region8: #{tpu_custom_call.1} parent=0 // pred_region
    _
  $region9: #{tpu_custom_call.1} parent=0 // pred_fallthru
    _
  // Predicated region
  $region10: #{tpu_custom_call.1} parent=0 // pred_check
    _
  $region11: #{tpu_custom_call.1} parent=0 // pred_check_branch
    %18 = sbr.rel (0) target = $region13
  $region12: #{tpu_custom_call.1} parent=0 // pred_region
    _
  $region13: #{tpu_custom_call.1} parent=0 // pred_fallthru
    _
  // Predicated region
  $region14: #{tpu_custom_call.1} parent=0 // pred_check
    _
  $region15: #{tpu_custom_call.1} parent=0 // pred_check_branch
    %20 = sbr.rel (0) target = $region17
  $region16: #{tpu_custom_call.1} parent=0 // pred_region
    _
  $region17: #{tpu_custom_call.1} parent=0 // pred_fallthru
    _
  // Predicated region
  $region18: #{tpu_custom_call.1} parent=0 // pred_check
    _
  $region19: #{tpu_custom_call.1} parent=0 // pred_check_branch
    %22 = sbr.rel (0) target = $region21
  $region20: #{tpu_custom_call.1} parent=0 // pred_region
    _
  $region21: #{tpu_custom_call.1} parent=0 // pred_fallthru
    _
  // Predicated region
  $region22: #{tpu_custom_call.1} parent=0 // pred_check
    _
  $region23: #{tpu_custom_call.1} parent=0 // pred_check_branch
    %24 = sbr.rel (0) target = $region25
  $region24: #{tpu_custom_call.1} parent=0 // pred_region
    _
  $region25: #{tpu_custom_call.1} parent=0 // pred_fallthru
    _
  %v25 = vld [vmem:[%s0] sm:$0xff]
  %v26 = vld [vmem:[%s0 + $0x8] sm:$0xff]
  %v27 = vld [vmem:[%s0 + $0x10] sm:$0xff]
  %v28 = vld [vmem:[%s0 + $0x18] sm:$0xff]
  %v29 = vld [vmem:[%s0 + $0x20] sm:$0xff]
  %v30 = vld [vmem:[%s0 + $0x28] sm:$0xff]
  %v31 = vld [vmem:[%s0 + $0x30] sm:$0xff]
  %v32 = vld [vmem:[%s0 + $0x38] sm:$0xff]
  %v33 = vld [vmem:[%s1] sm:$0xff]
  %v34 = vld [vmem:[%s1 + $0x8] sm:$0xff]
  %v35 = vld [vmem:[%s3] sm:$0x1]
  %v37 = vperm.slane %v35, 0
  %vm39 = vcmask 130048
  %v41 = vsel %vm39, %v25, 0
  %v44 = vsel %vm39, %v26, 0
  %v47 = vsel %vm39, %v27, 0
  %v50 = vsel %vm39, %v28, 0
  %v53 = vsel %vm39, %v29, 0
  %v56 = vsel %vm39, %v30, 0
  %v59 = vsel %vm39, %v31, 0
  %v62 = vsel %vm39, %v32, 0
  %64 = vmatpush.msra.mxu0 0.0
  %65 = vmatpush.msra.mxu0 0.0
  %66 = vmatpush.msra.mxu0 0.0
  %67 = vmatpush.msra.mxu0 0.0
  %68 = vmatpush.msra.mxu0 0.0
  %69 = vmatpush.msra.mxu0 0.0
  %70 = vmatpush.msra.mxu0 0.0
  %71 = vmatpush.msra.mxu0 0.0
  %72 = vmatpush.msra.mxu0 0.0
  %73 = vmatpush.msra.mxu0 0.0
  %74 = vmatpush.msra.mxu0 0.0
  %75 = vmatpush.msra.mxu0 0.0
  %76 = vmatpush.msra.mxu0 0.0
  %77 = vmatpush.msra.mxu0 0.0
  %78 = vmatpush.msra.mxu0 %v34
  %79 = vmatpush.msra.mxu0 %v33
  %80 = vmatmul.f32.gmra.mxu0 %v41
  %v81 = vpop.f32.mrf.mxu0
  %v82 = vadd.f32 %v37, %v81
  %83 = vmatmul.f32.gmra.mxu0 %v44
  %v84 = vpop.f32.mrf.mxu0
  %v85 = vadd.f32 %v37, %v84
  %86 = vmatmul.f32.gmra.mxu0 %v47
  %v87 = vpop.f32.mrf.mxu0
  %v88 = vadd.f32 %v37, %v87
  %89 = vmatmul.f32.gmra.mxu0 %v50
  %v90 = vpop.f32.mrf.mxu0
  %v91 = vadd.f32 %v37, %v90
  %92 = vmatmul.f32.gmra.mxu0 %v53
  %v93 = vpop.f32.mrf.mxu0
  %v94 = vadd.f32 %v37, %v93
  %95 = vmatmul.f32.gmra.mxu0 %v56
  %v96 = vpop.f32.mrf.mxu0
  %v97 = vadd.f32 %v37, %v96
  %98 = vmatmul.f32.gmra.mxu0 %v59
  %v99 = vpop.f32.mrf.mxu0
  %v100 = vadd.f32 %v37, %v99
  %101 = vmatmul.f32.gmra.mxu0 %v62
  %v102 = vpop.f32.mrf.mxu0
  %v103 = vadd.f32 %v37, %v102
  %104 = vdwg.mxu0
  %105 = vst [vmem:[#allocation2] sm:$0xff] %v82
  %106 = vst [vmem:[#allocation2 + $0x8] sm:$0xff] %v85
  %107 = vst [vmem:[#allocation2 + $0x10] sm:$0xff] %v88
  %108 = vst [vmem:[#allocation2 + $0x18] sm:$0xff] %v91
  %109 = vst [vmem:[#allocation2 + $0x20] sm:$0xff] %v94
  %110 = vst [vmem:[#allocation2 + $0x28] sm:$0xff] %v97
  %111 = vst [vmem:[#allocation2 + $0x30] sm:$0xff] %v100
  %112 = vst [vmem:[#allocation2 + $0x38] sm:$0xff] %v103
  %p113 = scmp.eq.s32.totalorder 0, 0
  // Predicated region
  $region26: #{tpu_custom_call.1} parent=0 // pred_check
    %p114 = pneg %p113
  $region27: #{tpu_custom_call.1} parent=0 // pred_check_branch
    %116 = sbr.rel (%p114) target = $region29
  $region28: #{tpu_custom_call.1} parent=0 // pred_region
    %vm117 = vcmask 261120
    %118 = vst.msk [vmem:[#allocation3] sm:$0xff] %vm117, 0.0
    %119 = vst.msk [vmem:[#allocation4] sm:$0xff] %vm117, 0.0
  $region29: #{tpu_custom_call.1} parent=0 // pred_fallthru
    _
  %v120 = vlaneseq
  %v121 = vand.u32 %v120, 127
  %vm122 = vcmp.ge.s32.totalorder %v121, 64
  %vm123 = vcmp.lt.s32.totalorder %v121, 96
  %vm124 = vmand %vm122, %vm123
  %v125 = vld [vmem:[%s2] sm:$0xff]
  %v126 = vld [vmem:[%s2 + $0x8] sm:$0xff]
  %v127 = vld [vmem:[%s2 + $0x10] sm:$0xff]
  %v128 = vld [vmem:[%s2 + $0x18] sm:$0xff]
  %v129 = vld [vmem:[#allocation3] sm:$0xff]
  %v130 = vld [vmem:[#allocation4] sm:$0xff]
  %v131 = vld [vmem:[#allocation2] sm:$0xff]
  %vm132 = vcmask 261120
  %v134 = vsel %vm132, %v129, 0
  %136 = vmatpush.msra.mxu0 0.0
  %137 = vmatpush.msra.mxu0 0.0
  %138 = vmatpush.msra.mxu0 0.0
  %139 = vmatpush.msra.mxu0 0.0
  %140 = vmatpush.msra.mxu0 0.0
  %141 = vmatpush.msra.mxu0 0.0
  %142 = vmatpush.msra.mxu0 0.0
  %143 = vmatpush.msra.mxu0 0.0
  %144 = vmatpush.msra.mxu0 0.0
  %145 = vmatpush.msra.mxu0 0.0
  %146 = vmatpush.msra.mxu0 0.0
  %147 = vmatpush.msra.mxu0 0.0
  %148 = vmatpush.msra.mxu0 %v128
  %149 = vmatpush.msra.mxu0 %v127
  %150 = vmatpush.msra.mxu0 %v126
  %151 = vmatpush.msra.mxu0 %v125
  %152 = vmatmul.f32.gmra.mxu0 %v134
  %v153 = vpop.f32.mrf.mxu0
  %v154 = vadd.f32 0.0, %v153
  %155 = vdwg.mxu0
  %v156 = vadd.f32 %v131, %v154
  %v157 = vtanh.pop %v156
  %v158 = vmul.f32 %v157, 0.5
  %v159 = vadd.f32 %v158, 0.5
  %v160 = vsel %vm124, %v157, %v159
  %162 = vrot.lane.b32.xlu0 %v130, 32
  %v163 = vpop.permute.xlu0 %162
  %v165 = vmul.f32 %v160, %v163
  %167 = vrot.lane.b32.xlu0 %v160, 64
  %v168 = vpop.permute.xlu0 %167
  %v170 = vmul.f32 %v160, %v168
  %172 = vrot.lane.b32.xlu0 %v170, 32
  %v173 = vpop.permute.xlu0 %172
  %v175 = vadd.f32 %v165, %v173
  %v176 = vtanh.pop %v175
  %178 = vrot.lane.b32.xlu0 %v176, 64
  %v179 = vpop.permute.xlu0 %178
  %v181 = vmul.f32 %v160, %v179
  %s182 = scalar_lea.vmem [#allocation2], 8
  %v183 = vld [vmem:[%s182] sm:$0xff]
  %185 = vrot.lane.b32.xlu0 %v181, 32
  %v186 = vpop.permute.xlu0 %185
  %v187 = vsel %vm132, %v186, 0
  %189 = vmatpush.msra.mxu0 0.0
  %190 = vmatpush.msra.mxu0 0.0
  %191 = vmatpush.msra.mxu0 0.0
  %192 = vmatpush.msra.mxu0 0.0
  %193 = vmatpush.msra.mxu0 0.0
  %194 = vmatpush.msra.mxu0 0.0
  %195 = vmatpush.msra.mxu0 0.0
  %196 = vmatpush.msra.mxu0 0.0
  %197 = vmatpush.msra.mxu0 0.0
  %198 = vmatpush.msra.mxu0 0.0
  %199 = vmatpush.msra.mxu0 0.0
  %200 = vmatpush.msra.mxu0 0.0
  %201 = vmatpush.msra.mxu0 %v128
  %202 = vmatpush.msra.mxu0 %v127
  %203 = vmatpush.msra.mxu0 %v126
  %204 = vmatpush.msra.mxu0 %v125
  %205 = vmatmul.f32.gmra.mxu0 %v187
  %v206 = vpop.f32.mrf.mxu0
  %v207 = vadd.f32 0.0, %v206
  %208 = vdwg.mxu0
  %v209 = vadd.f32 %v183, %v207
  %v210 = vtanh.pop %v209
  %v211 = vmul.f32 %v210, 0.5
  %v212 = vadd.f32 %v211, 0.5
  %v213 = vsel %vm124, %v210, %v212
  %v214 = vmul.f32 %v213, %v175
  %216 = vrot.lane.b32.xlu0 %v213, 64
  %v217 = vpop.permute.xlu0 %216
  %v219 = vmul.f32 %v213, %v217
  %221 = vrot.lane.b32.xlu0 %v219, 32
  %v222 = vpop.permute.xlu0 %221
  %v224 = vadd.f32 %v214, %v222
  %v225 = vtanh.pop %v224
  %227 = vrot.lane.b32.xlu0 %v225, 64
  %v228 = vpop.permute.xlu0 %227
  %v230 = vmul.f32 %v213, %v228
  %s231 = scalar_lea.vmem [#allocation2], 16
  %v232 = vld [vmem:[%s231] sm:$0xff]
  %234 = vrot.lane.b32.xlu0 %v230, 32
  %v235 = vpop.permute.xlu0 %234
  %v236 = vsel %vm132, %v235, 0
  %238 = vmatpush.msra.mxu0 0.0
  %239 = vmatpush.msra.mxu0 0.0
  %240 = vmatpush.msra.mxu0 0.0
  %241 = vmatpush.msra.mxu0 0.0
  %242 = vmatpush.msra.mxu0 0.0
  %243 = vmatpush.msra.mxu0 0.0
  %244 = vmatpush.msra.mxu0 0.0
  %245 = vmatpush.msra.mxu0 0.0
  %246 = vmatpush.msra.mxu0 0.0
  %247 = vmatpush.msra.mxu0 0.0
  %248 = vmatpush.msra.mxu0 0.0
  %249 = vmatpush.msra.mxu0 0.0
  %250 = vmatpush.msra.mxu0 %v128
  %251 = vmatpush.msra.mxu0 %v127
  %252 = vmatpush.msra.mxu0 %v126
  %253 = vmatpush.msra.mxu0 %v125
  %254 = vmatmul.f32.gmra.mxu0 %v236
  %v255 = vpop.f32.mrf.mxu0
  %v256 = vadd.f32 0.0, %v255
  %257 = vdwg.mxu0
  %v258 = vadd.f32 %v232, %v256
  %v259 = vtanh.pop %v258
  %v260 = vmul.f32 %v259, 0.5
  %v261 = vadd.f32 %v260, 0.5
  %v262 = vsel %vm124, %v259, %v261
  %v263 = vmul.f32 %v262, %v224
  %265 = vrot.lane.b32.xlu0 %v262, 64
  %v266 = vpop.permute.xlu0 %265
  %v268 = vmul.f32 %v262, %v266
  %270 = vrot.lane.b32.xlu0 %v268, 32
  %v271 = vpop.permute.xlu0 %270
  %v273 = vadd.f32 %v263, %v271
  %v274 = vtanh.pop %v273
  %276 = vrot.lane.b32.xlu0 %v274, 64
  %v277 = vpop.permute.xlu0 %276
  %v279 = vmul.f32 %v262, %v277
  %s280 = scalar_lea.vmem [#allocation2], 24
  %v281 = vld [vmem:[%s280] sm:$0xff]
  %283 = vrot.lane.b32.xlu0 %v279, 32
  %v284 = vpop.permute.xlu0 %283
  %v285 = vsel %vm132, %v284, 0
  %287 = vmatpush.msra.mxu0 0.0
  %288 = vmatpush.msra.mxu0 0.0
  %289 = vmatpush.msra.mxu0 0.0
  %290 = vmatpush.msra.mxu0 0.0
  %291 = vmatpush.msra.mxu0 0.0
  %292 = vmatpush.msra.mxu0 0.0
  %293 = vmatpush.msra.mxu0 0.0
  %294 = vmatpush.msra.mxu0 0.0
  %295 = vmatpush.msra.mxu0 0.0
  %296 = vmatpush.msra.mxu0 0.0
  %297 = vmatpush.msra.mxu0 0.0
  %298 = vmatpush.msra.mxu0 0.0
  %299 = vmatpush.msra.mxu0 %v128
  %300 = vmatpush.msra.mxu0 %v127
  %301 = vmatpush.msra.mxu0 %v126
  %302 = vmatpush.msra.mxu0 %v125
  %303 = vmatmul.f32.gmra.mxu0 %v285
  %v304 = vpop.f32.mrf.mxu0
  %v305 = vadd.f32 0.0, %v304
  %306 = vdwg.mxu0
  %v307 = vadd.f32 %v281, %v305
  %v308 = vtanh.pop %v307
  %v309 = vmul.f32 %v308, 0.5
  %v310 = vadd.f32 %v309, 0.5
  %v311 = vsel %vm124, %v308, %v310
  %v312 = vmul.f32 %v311, %v273
  %314 = vrot.lane.b32.xlu0 %v311, 64
  %v315 = vpop.permute.xlu0 %314
  %v317 = vmul.f32 %v311, %v315
  %319 = vrot.lane.b32.xlu0 %v317, 32
  %v320 = vpop.permute.xlu0 %319
  %v322 = vadd.f32 %v312, %v320
  %v323 = vtanh.pop %v322
  %325 = vrot.lane.b32.xlu0 %v323, 64
  %v326 = vpop.permute.xlu0 %325
  %v328 = vmul.f32 %v311, %v326
  %s329 = scalar_lea.vmem [#allocation2], 32
  %v330 = vld [vmem:[%s329] sm:$0xff]
  %332 = vrot.lane.b32.xlu0 %v328, 32
  %v333 = vpop.permute.xlu0 %332
  %v334 = vsel %vm132, %v333, 0
  %336 = vmatpush.msra.mxu0 0.0
  %337 = vmatpush.msra.mxu0 0.0
  %338 = vmatpush.msra.mxu0 0.0
  %339 = vmatpush.msra.mxu0 0.0
  %340 = vmatpush.msra.mxu0 0.0
  %341 = vmatpush.msra.mxu0 0.0
  %342 = vmatpush.msra.mxu0 0.0
  %343 = vmatpush.msra.mxu0 0.0
  %344 = vmatpush.msra.mxu0 0.0
  %345 = vmatpush.msra.mxu0 0.0
  %346 = vmatpush.msra.mxu0 0.0
  %347 = vmatpush.msra.mxu0 0.0
  %348 = vmatpush.msra.mxu0 %v128
  %349 = vmatpush.msra.mxu0 %v127
  %350 = vmatpush.msra.mxu0 %v126
  %351 = vmatpush.msra.mxu0 %v125
  %352 = vmatmul.f32.gmra.mxu0 %v334
  %v353 = vpop.f32.mrf.mxu0
  %v354 = vadd.f32 0.0, %v353
  %355 = vdwg.mxu0
  %v356 = vadd.f32 %v330, %v354
  %v357 = vtanh.pop %v356
  %v358 = vmul.f32 %v357, 0.5
  %v359 = vadd.f32 %v358, 0.5
  %v360 = vsel %vm124, %v357, %v359
  %v361 = vmul.f32 %v360, %v322
  %363 = vrot.lane.b32.xlu0 %v360, 64
  %v364 = vpop.permute.xlu0 %363
  %v366 = vmul.f32 %v360, %v364
  %368 = vrot.lane.b32.xlu0 %v366, 32
  %v369 = vpop.permute.xlu0 %368
  %v371 = vadd.f32 %v361, %v369
  %v372 = vtanh.pop %v371
  %374 = vrot.lane.b32.xlu0 %v372, 64
  %v375 = vpop.permute.xlu0 %374
  %v377 = vmul.f32 %v360, %v375
  %s378 = scalar_lea.vmem [#allocation2], 40
  %v379 = vld [vmem:[%s378] sm:$0xff]
  %381 = vrot.lane.b32.xlu0 %v377, 32
  %v382 = vpop.permute.xlu0 %381
  %v383 = vsel %vm132, %v382, 0
  %385 = vmatpush.msra.mxu0 0.0
  %386 = vmatpush.msra.mxu0 0.0
  %387 = vmatpush.msra.mxu0 0.0
  %388 = vmatpush.msra.mxu0 0.0
  %389 = vmatpush.msra.mxu0 0.0
  %390 = vmatpush.msra.mxu0 0.0
  %391 = vmatpush.msra.mxu0 0.0
  %392 = vmatpush.msra.mxu0 0.0
  %393 = vmatpush.msra.mxu0 0.0
  %394 = vmatpush.msra.mxu0 0.0
  %395 = vmatpush.msra.mxu0 0.0
  %396 = vmatpush.msra.mxu0 0.0
  %397 = vmatpush.msra.mxu0 %v128
  %398 = vmatpush.msra.mxu0 %v127
  %399 = vmatpush.msra.mxu0 %v126
  %400 = vmatpush.msra.mxu0 %v125
  %401 = vmatmul.f32.gmra.mxu0 %v383
  %v402 = vpop.f32.mrf.mxu0
  %v403 = vadd.f32 0.0, %v402
  %404 = vdwg.mxu0
  %v405 = vadd.f32 %v379, %v403
  %v406 = vtanh.pop %v405
  %v407 = vmul.f32 %v406, 0.5
  %v408 = vadd.f32 %v407, 0.5
  %v409 = vsel %vm124, %v406, %v408
  %v410 = vmul.f32 %v409, %v371
  %412 = vrot.lane.b32.xlu0 %v409, 64
  %v413 = vpop.permute.xlu0 %412
  %v415 = vmul.f32 %v409, %v413
  %417 = vrot.lane.b32.xlu0 %v415, 32
  %v418 = vpop.permute.xlu0 %417
  %v420 = vadd.f32 %v410, %v418
  %v421 = vtanh.pop %v420
  %423 = vrot.lane.b32.xlu0 %v421, 64
  %v424 = vpop.permute.xlu0 %423
  %v426 = vmul.f32 %v409, %v424
  %s427 = scalar_lea.vmem [#allocation2], 48
  %v428 = vld [vmem:[%s427] sm:$0xff]
  %430 = vrot.lane.b32.xlu0 %v426, 32
  %v431 = vpop.permute.xlu0 %430
  %v432 = vsel %vm132, %v431, 0
  %434 = vmatpush.msra.mxu0 0.0
  %435 = vmatpush.msra.mxu0 0.0
  %436 = vmatpush.msra.mxu0 0.0
  %437 = vmatpush.msra.mxu0 0.0
  %438 = vmatpush.msra.mxu0 0.0
  %439 = vmatpush.msra.mxu0 0.0
  %440 = vmatpush.msra.mxu0 0.0
  %441 = vmatpush.msra.mxu0 0.0
  %442 = vmatpush.msra.mxu0 0.0
  %443 = vmatpush.msra.mxu0 0.0
  %444 = vmatpush.msra.mxu0 0.0
  %445 = vmatpush.msra.mxu0 0.0
  %446 = vmatpush.msra.mxu0 %v128
  %447 = vmatpush.msra.mxu0 %v127
  %448 = vmatpush.msra.mxu0 %v126
  %449 = vmatpush.msra.mxu0 %v125
  %450 = vmatmul.f32.gmra.mxu0 %v432
  %v451 = vpop.f32.mrf.mxu0
  %v452 = vadd.f32 0.0, %v451
  %453 = vdwg.mxu0
  %v454 = vadd.f32 %v428, %v452
  %v455 = vtanh.pop %v454
  %v456 = vmul.f32 %v455, 0.5
  %v457 = vadd.f32 %v456, 0.5
  %v458 = vsel %vm124, %v455, %v457
  %v459 = vmul.f32 %v458, %v420
  %461 = vrot.lane.b32.xlu0 %v458, 64
  %v462 = vpop.permute.xlu0 %461
  %v464 = vmul.f32 %v458, %v462
  %466 = vrot.lane.b32.xlu0 %v464, 32
  %v467 = vpop.permute.xlu0 %466
  %v469 = vadd.f32 %v459, %v467
  %v470 = vtanh.pop %v469
  %472 = vrot.lane.b32.xlu0 %v470, 64
  %v473 = vpop.permute.xlu0 %472
  %v475 = vmul.f32 %v458, %v473
  %s476 = scalar_lea.vmem [#allocation2], 56
  %v477 = vld [vmem:[%s476] sm:$0xff]
  %479 = vrot.lane.b32.xlu0 %v475, 32
  %v480 = vpop.permute.xlu0 %479
  %v481 = vsel %vm132, %v480, 0
  %483 = vmatpush.msra.mxu0 0.0
  %484 = vmatpush.msra.mxu0 0.0
  %485 = vmatpush.msra.mxu0 0.0
  %486 = vmatpush.msra.mxu0 0.0
  %487 = vmatpush.msra.mxu0 0.0
  %488 = vmatpush.msra.mxu0 0.0
  %489 = vmatpush.msra.mxu0 0.0
  %490 = vmatpush.msra.mxu0 0.0
  %491 = vmatpush.msra.mxu0 0.0
  %492 = vmatpush.msra.mxu0 0.0
  %493 = vmatpush.msra.mxu0 0.0
  %494 = vmatpush.msra.mxu0 0.0
  %495 = vmatpush.msra.mxu0 %v128
  %496 = vmatpush.msra.mxu0 %v127
  %497 = vmatpush.msra.mxu0 %v126
  %498 = vmatpush.msra.mxu0 %v125
  %499 = vmatmul.f32.gmra.mxu0 %v481
  %v500 = vpop.f32.mrf.mxu0
  %v501 = vadd.f32 0.0, %v500
  %502 = vdwg.mxu0
  %v503 = vadd.f32 %v477, %v501
  %v504 = vtanh.pop %v503
  %v505 = vmul.f32 %v504, 0.5
  %v506 = vadd.f32 %v505, 0.5
  %v507 = vsel %vm124, %v504, %v506
  %v508 = vmul.f32 %v507, %v469
  %510 = vrot.lane.b32.xlu0 %v507, 64
  %v511 = vpop.permute.xlu0 %510
  %v513 = vmul.f32 %v507, %v511
  %515 = vrot.lane.b32.xlu0 %v513, 32
  %v516 = vpop.permute.xlu0 %515
  %v518 = vadd.f32 %v508, %v516
  %v519 = vtanh.pop %v518
  %521 = vrot.lane.b32.xlu0 %v519, 64
  %v522 = vpop.permute.xlu0 %521
  %v524 = vmul.f32 %v507, %v522
  %526 = vrot.lane.b32.xlu0 %v524, 32
  %v527 = vpop.permute.xlu0 %526
  %529 = vst.msk [vmem:[#allocation3] sm:$0xff] %vm132, %v527
  %531 = vrot.lane.b32.xlu0 %v518, 96
  %v532 = vpop.permute.xlu0 %531
  %534 = vst.msk [vmem:[#allocation4] sm:$0xff] %vm132, %v532
  // Predicated region
  $region30: #{tpu_custom_call.1} parent=0 // pred_check
    %p535 = pneg %p113
  $region31: #{tpu_custom_call.1} parent=0 // pred_check_branch
    %537 = sbr.rel (%p535) target = $region33
  $region32: #{tpu_custom_call.1} parent=0 // pred_region
    %v538 = vld [vmem:[%s4] sm:$0xff]
    %v539 = vld [vmem:[%s4 + $0x8] sm:$0xff]
    %v540 = vld [vmem:[%s4 + $0x10] sm:$0xff]
    %v541 = vld [vmem:[%s4 + $0x18] sm:$0xff]
    %v542 = vld [vmem:[#allocation5] sm:$0x1]
    %v544 = vperm.slane %v542, 0
    %v546 = vsel %vm132, %v527, 0
    %548 = vmatpush.msra.mxu0 0.0
    %549 = vmatpush.msra.mxu0 0.0
    %550 = vmatpush.msra.mxu0 0.0
    %551 = vmatpush.msra.mxu0 0.0
    %552 = vmatpush.msra.mxu0 0.0
    %553 = vmatpush.msra.mxu0 0.0
    %554 = vmatpush.msra.mxu0 0.0
    %555 = vmatpush.msra.mxu0 0.0
    %556 = vmatpush.msra.mxu0 0.0
    %557 = vmatpush.msra.mxu0 0.0
    %558 = vmatpush.msra.mxu0 0.0
    %559 = vmatpush.msra.mxu0 0.0
    %560 = vmatpush.msra.mxu0 %v541
    %561 = vmatpush.msra.mxu0 %v540
    %562 = vmatpush.msra.mxu0 %v539
    %563 = vmatpush.msra.mxu0 %v538
    %564 = vmatmul.f32.gmra.mxu0 %v546
    %v565 = vpop.f32.mrf.mxu0
    %v566 = vadd.f32 %v544, %v565
    %567 = vdwg.mxu0
    %vm568 = vcmask 7168
    %569 = vst.msk [vmem:[%s6] sm:$0xff] %vm568, %v566
  $region33: #{tpu_custom_call.1} parent=0 // pred_fallthru
    _
  // Predicated region
  $region34: #{tpu_custom_call.1} parent=0 // pred_check
    _
  $region35: #{tpu_custom_call.1} parent=0 // pred_check_branch
    %571 = sbr.rel (0) target = $region37
  $region36: #{tpu_custom_call.1} parent=0 // pred_region
    _
  $region37: #{tpu_custom_call.1} parent=0 // pred_fallthru
    _
  // Predicated region
  $region38: #{tpu_custom_call.1} parent=0 // pred_check
    _
  $region39: #{tpu_custom_call.1} parent=0 // pred_check_branch
    %573 = sbr.rel (0) target = $region41
  $region40: #{tpu_custom_call.1} parent=0 // pred_region
    _
  $region41: #{tpu_custom_call.1} parent=0 // pred_fallthru
    _

</llo_original>
